<compile_context>
chip_gen: v6e
topology: v6e:2x2x1
jax: 0.10.0
libtpu: 0.0.40
codegen_flags: <defaults>
</compile_context>

<pallas_src>
import functools

import jax
import jax.numpy as jnp
from jax.experimental import pallas as pl
from jax.experimental.pallas import tpu as pltpu

H1, H2 = 400, 300            # natural (PyTorch) hidden widths
H1P, H2P = 512, 384          # lane-aligned padded widths (multiples of 128)
DEFAULT_TILE_B = 256         # fills the 256-wide MXU on v6e/v7x (÷128 for v5e)


def _critic_kernel(x_ref, u_ref, w1s_ref, w1a_ref, b1_ref, w2_ref, b2_ref,
                   w3_ref, b3_ref, out_ref):
    # Layer 1: Linear(S+A, 400) + ReLU.  concat([x, u]) @ W1 is folded into a
    # split matmul so the wrapper never materializes xu in HBM.
    h1 = jnp.dot(x_ref[...], w1s_ref[...], preferred_element_type=jnp.float32)
    h1 = h1 + jnp.dot(u_ref[...], w1a_ref[...],
                      preferred_element_type=jnp.float32)
    h1 = jnp.maximum(h1 + b1_ref[...], 0.0)                      # (TB, H1P)

    # Layer 2: Linear(400, 300) + ReLU (padded to 512 -> 384; zeros propagate).
    h2 = jnp.dot(h1, w2_ref[...], preferred_element_type=jnp.float32)
    h2 = jnp.maximum(h2 + b2_ref[...], 0.0)                      # (TB, H2P)

    # Layer 3: Linear(300, 1).  N=1 -> VPU multiply + lane reduction (XLU),
    # not a pathological 1-column MXU matmul.  b3 is an SMEM scalar.
    q = jnp.sum(h2 * w3_ref[...], axis=-1, keepdims=True) + b3_ref[0, 0]
    out_ref[...] = q.astype(out_ref.dtype)


def prepare_critic_params(params, state_dim):
    """One-time repack of natural-layout params into the kernel layout:
    split W1 into state/action slabs and zero-pad hidden dims to 512/384."""
    w1, b1, w2, b2, w3, b3 = params
    w1s = jnp.pad(w1[:state_dim], ((0, 0), (0, H1P - H1)))       # (S, 512)
    w1a = jnp.pad(w1[state_dim:], ((0, 0), (0, H1P - H1)))       # (A, 512)
    b1p = jnp.pad(b1, ((0, 0), (0, H1P - H1)))                   # (1, 512)
    w2p = jnp.pad(w2, ((0, H1P - H1), (0, H2P - H2)))            # (512, 384)
    b2p = jnp.pad(b2, ((0, 0), (0, H2P - H2)))                   # (1, 384)
    w3p = jnp.pad(w3.reshape(1, H2), ((0, 0), (0, H2P - H2)))    # (1, 384)
    b3p = b3.reshape(1, 1)                                       # (1, 1) SMEM
    return w1s, w1a, b1p, w2p, b2p, w3p, b3p


@functools.partial(jax.jit, static_argnames=("tile_b",))
def critic_forward(x, u, kparams, tile_b=DEFAULT_TILE_B):
    """x: (B, state_dim) f32, u: (B, action_dim) f32 -> (B, 1) f32."""
    w1s, w1a, b1, w2, b2, w3, b3 = kparams
    B, S = x.shape
    A = u.shape[1]

    # Round batch up to a sublane multiple, cap the tile, pad to a whole
    # number of tiles (zero rows compute harmlessly and are sliced off).
    b8 = ((B + 7) // 8) * 8
    tb = min(tile_b, b8)
    bp = pl.cdiv(b8, tb) * tb
    if bp != B:
        x = jnp.pad(x, ((0, bp - B), (0, 0)))
        u = jnp.pad(u, ((0, bp - B), (0, 0)))
    grid = (bp // tb,)

    batch_spec = lambda f: pl.BlockSpec((tb, f), lambda i: (i, 0))
    const_spec = lambda shp: pl.BlockSpec(shp, lambda i: (0, 0))  # VMEM-resident

    flops = 2 * bp * (S * H1 + A * H1 + H1 * H2 + H2)
    bytes_accessed = 4 * (bp * (S + A + 1)
                          + (S + A) * H1P + H1P
                          + H1P * H2P + H2P + H2P + 1)

    out = pl.pallas_call(
        _critic_kernel,
        out_shape=jax.ShapeDtypeStruct((bp, 1), jnp.float32),
        grid=grid,
        in_specs=[
            batch_spec(S),                        # x        (batch-tiled)
            batch_spec(A),                        # u        (batch-tiled)
            const_spec((S, H1P)),                 # W1 state rows (resident)
            const_spec((A, H1P)),                 # W1 action rows (resident)
            const_spec((1, H1P)),                 # b1
            const_spec((H1P, H2P)),               # W2
            const_spec((1, H2P)),                 # b2
            const_spec((1, H2P)),                 # W3 row
            pl.BlockSpec(memory_space=pltpu.MemorySpace.SMEM),  # b3 scalar
        ],
        out_specs=batch_spec(1),
        compiler_params=pltpu.CompilerParams(
            dimension_semantics=("parallel",)),   # v7x: shard tiles over 2 TCs
        cost_estimate=pl.CostEstimate(flops=flops, transcendentals=0,
                                      bytes_accessed=bytes_accessed),
    )(x, u, w1s, w1a, b1, w2, b2, w3, b3)
    return out[:B]


def init_critic_params(key, state_dim, action_dim):
    """nn.Linear-style U(-1/sqrt(fan_in), 1/sqrt(fan_in)) init.
    Natural layout: W is (in_features, out_features)."""
    dims = [(state_dim + action_dim, H1), (H1, H2), (H2, 1)]
    params = []
    for fan_in, fan_out in dims:
        key, kw, kb = jax.random.split(key, 3)
        bound = 1.0 / jnp.sqrt(float(fan_in))
        w = jax.random.uniform(kw, (fan_in, fan_out), jnp.float32,
                               minval=-bound, maxval=bound)
        b = jax.random.uniform(kb, (1, fan_out), jnp.float32,
                               minval=-bound, maxval=bound)
        params += [w, b]
    return tuple(params)


def critic_ref(x, u, params):
    """Plain-JAX reference (natural-layout params) for a sanity check."""
    w1, b1, w2, b2, w3, b3 = params
    xu = jnp.concatenate([x, u], axis=1)
    h1 = jnp.maximum(xu @ w1 + b1, 0.0)
    h2 = jnp.maximum(h1 @ w2 + b2, 0.0)
    return h2 @ w3 + b3


if __name__ == "__main__":
    batch, state_dim, action_dim = 8, 16, 4

    key = jax.random.PRNGKey(0)
    kx, ku, kp = jax.random.split(key, 3)
    x = jax.random.normal(kx, (batch, state_dim), jnp.float32)
    u = jax.random.normal(ku, (batch, action_dim), jnp.float32)
    params = init_critic_params(kp, state_dim, action_dim)
    kparams = prepare_critic_params(params, state_dim)

    q = critic_forward(x, u, kparams)
    jax.block_until_ready(q)

    q_ref = critic_ref(x, u, params)
    assert q.shape == (batch, 1)
    assert jnp.allclose(q, q_ref, atol=1e-4, rtol=1e-4)

    print("KERNEL_OK")
</pallas_src>

<mosaic_0001>
module attributes {stable_mosaic.version = 11 : i64} {
  func.func @_critic_kernel(%arg0: i32, %arg1: memref<8x16xf32, #tpu.memory_space<vmem>>, %arg2: memref<8x4xf32, #tpu.memory_space<vmem>>, %arg3: memref<16x512xf32, #tpu.memory_space<vmem>>, %arg4: memref<4x512xf32, #tpu.memory_space<vmem>>, %arg5: memref<1x512xf32, #tpu.memory_space<vmem>>, %arg6: memref<512x384xf32, #tpu.memory_space<vmem>>, %arg7: memref<1x384xf32, #tpu.memory_space<vmem>>, %arg8: memref<1x384xf32, #tpu.memory_space<vmem>>, %arg9: memref<1x1xf32, #tpu.memory_space<smem>>, %arg10: memref<8x1xf32, #tpu.memory_space<vmem>>) attributes {dimension_semantics = [#tpu.dimension_semantics<parallel>], iteration_bounds = array<i64: 1>, scalar_prefetch = 0 : i64, scratch_operands = 0 : i64, tpu.core_type = #tpu.core_type<tc>, window_params = [{transform_indices = @transform_0, window_bounds = array<i64: 8, 16>}, {transform_indices = @transform_1, window_bounds = array<i64: 8, 4>}, {pipeline_mode = #tpu.pipeline_mode<synchronous>, transform_indices = @transform_2, window_bounds = array<i64: 16, 512>}, {pipeline_mode = #tpu.pipeline_mode<synchronous>, transform_indices = @transform_3, window_bounds = array<i64: 4, 512>}, {pipeline_mode = #tpu.pipeline_mode<synchronous>, transform_indices = @transform_4, window_bounds = array<i64: 1, 512>}, {pipeline_mode = #tpu.pipeline_mode<synchronous>, transform_indices = @transform_5, window_bounds = array<i64: 512, 384>}, {pipeline_mode = #tpu.pipeline_mode<synchronous>, transform_indices = @transform_6, window_bounds = array<i64: 1, 384>}, {pipeline_mode = #tpu.pipeline_mode<synchronous>, transform_indices = @transform_7, window_bounds = array<i64: 1, 384>}, {transform_indices = @transform_8, window_bounds = array<i64: 1, 1>}, {transform_indices = @transform_9, window_bounds = array<i64: 8, 1>}]} {
    %c0 = arith.constant 0 : index
    %c0_0 = arith.constant 0 : index
    %0 = vector.load %arg1[%c0, %c0_0] : memref<8x16xf32, #tpu.memory_space<vmem>>, vector<8x16xf32>
    %c0_1 = arith.constant 0 : index
    %c0_2 = arith.constant 0 : index
    %1 = vector.load %arg3[%c0_1, %c0_2] : memref<16x512xf32, #tpu.memory_space<vmem>>, vector<16x512xf32>
    %cst = arith.constant dense<0.000000e+00> : vector<8x512xf32>
    %2 = tpu.matmul %0, %1, %cst {dimension_numbers = #tpu.dot_dimension_numbers<[1], [0], [0], [1], [0, 0, 1, 1], [], []>} : vector<8x16xf32>, vector<16x512xf32>, vector<8x512xf32> -> vector<8x512xf32>
    %c0_3 = arith.constant 0 : index
    %c0_4 = arith.constant 0 : index
    %3 = vector.load %arg2[%c0_3, %c0_4] : memref<8x4xf32, #tpu.memory_space<vmem>>, vector<8x4xf32>
    %c0_5 = arith.constant 0 : index
    %c0_6 = arith.constant 0 : index
    %4 = vector.load %arg4[%c0_5, %c0_6] : memref<4x512xf32, #tpu.memory_space<vmem>>, vector<4x512xf32>
    %cst_7 = arith.constant dense<0.000000e+00> : vector<8x512xf32>
    %5 = tpu.matmul %3, %4, %cst_7 {dimension_numbers = #tpu.dot_dimension_numbers<[1], [0], [0], [1], [0, 0, 1, 1], [], []>} : vector<8x4xf32>, vector<4x512xf32>, vector<8x512xf32> -> vector<8x512xf32>
    %6 = arith.addf %2, %5 : vector<8x512xf32>
    %c0_8 = arith.constant 0 : index
    %c0_9 = arith.constant 0 : index
    %7 = vector.load %arg5[%c0_8, %c0_9] : memref<1x512xf32, #tpu.memory_space<vmem>>, vector<1x512xf32>
    %8 = vector.broadcast %7 : vector<1x512xf32> to vector<8x512xf32>
    %9 = arith.addf %6, %8 : vector<8x512xf32>
    %cst_10 = arith.constant 0.000000e+00 : f32
    %10 = vector.broadcast %cst_10 : f32 to vector<8x512xf32>
    %11 = arith.maximumf %9, %10 : vector<8x512xf32>
    %c0_11 = arith.constant 0 : index
    %c0_12 = arith.constant 0 : index
    %12 = vector.load %arg6[%c0_11, %c0_12] : memref<512x384xf32, #tpu.memory_space<vmem>>, vector<512x384xf32>
    %cst_13 = arith.constant dense<0.000000e+00> : vector<8x384xf32>
    %13 = tpu.matmul %11, %12, %cst_13 {dimension_numbers = #tpu.dot_dimension_numbers<[1], [0], [0], [1], [0, 0, 1, 1], [], []>} : vector<8x512xf32>, vector<512x384xf32>, vector<8x384xf32> -> vector<8x384xf32>
    %c0_14 = arith.constant 0 : index
    %c0_15 = arith.constant 0 : index
    %14 = vector.load %arg7[%c0_14, %c0_15] : memref<1x384xf32, #tpu.memory_space<vmem>>, vector<1x384xf32>
    %15 = vector.broadcast %14 : vector<1x384xf32> to vector<8x384xf32>
    %16 = arith.addf %13, %15 : vector<8x384xf32>
    %cst_16 = arith.constant 0.000000e+00 : f32
    %17 = vector.broadcast %cst_16 : f32 to vector<8x384xf32>
    %18 = arith.maximumf %16, %17 : vector<8x384xf32>
    %c0_17 = arith.constant 0 : index
    %c0_18 = arith.constant 0 : index
    %19 = vector.load %arg8[%c0_17, %c0_18] : memref<1x384xf32, #tpu.memory_space<vmem>>, vector<1x384xf32>
    %20 = vector.broadcast %19 : vector<1x384xf32> to vector<8x384xf32>
    %21 = arith.mulf %18, %20 : vector<8x384xf32>
    %cst_19 = arith.constant dense<0.000000e+00> : vector<8xf32>
    %22 = vector.multi_reduction <add>, %21, %cst_19 [1] : vector<8x384xf32> to vector<8xf32>
    %23 = vector.shape_cast %22 : vector<8xf32> to vector<8x1xf32>
    %c0_20 = arith.constant 0 : index
    %c0_21 = arith.constant 0 : index
    %24 = memref.load %arg9[%c0_20, %c0_21] : memref<1x1xf32, #tpu.memory_space<smem>>
    %25 = vector.broadcast %24 : f32 to vector<8x1xf32>
    %26 = arith.addf %23, %25 : vector<8x1xf32>
    %c0_22 = arith.constant 0 : index
    %c0_23 = arith.constant 0 : index
    %27 = vector.load %arg10[%c0_22, %c0_23] : memref<8x1xf32, #tpu.memory_space<vmem>>, vector<8x1xf32>
    tpu.vector_store %arg10[%c0_22, %c0_23], %26 {strides = array<i32>} : memref<8x1xf32, #tpu.memory_space<vmem>>, vector<8x1xf32>,
    return
  }
  func.func @transform_0(%arg0: i32) -> (i32, i32) {
    %c0_i32 = arith.constant 0 : i32
    %c0_i32_0 = arith.constant 0 : i32
    return %arg0, %c0_i32 : i32, i32
  }
  func.func @transform_1(%arg0: i32) -> (i32, i32) {
    %c0_i32 = arith.constant 0 : i32
    %c0_i32_0 = arith.constant 0 : i32
    return %arg0, %c0_i32 : i32, i32
  }
  func.func @transform_2(%arg0: i32) -> (i32, i32) {
    %c0_i32 = arith.constant 0 : i32
    %c0_i32_0 = arith.constant 0 : i32
    %c0_i32_1 = arith.constant 0 : i32
    return %c0_i32, %c0_i32_0 : i32, i32
  }
  func.func @transform_3(%arg0: i32) -> (i32, i32) {
    %c0_i32 = arith.constant 0 : i32
    %c0_i32_0 = arith.constant 0 : i32
    %c0_i32_1 = arith.constant 0 : i32
    return %c0_i32, %c0_i32_0 : i32, i32
  }
  func.func @transform_4(%arg0: i32) -> (i32, i32) {
    %c0_i32 = arith.constant 0 : i32
    %c0_i32_0 = arith.constant 0 : i32
    %c0_i32_1 = arith.constant 0 : i32
    return %c0_i32, %c0_i32_0 : i32, i32
  }
  func.func @transform_5(%arg0: i32) -> (i32, i32) {
    %c0_i32 = arith.constant 0 : i32
    %c0_i32_0 = arith.constant 0 : i32
    %c0_i32_1 = arith.constant 0 : i32
    return %c0_i32, %c0_i32_0 : i32, i32
  }
  func.func @transform_6(%arg0: i32) -> (i32, i32) {
    %c0_i32 = arith.constant 0 : i32
    %c0_i32_0 = arith.constant 0 : i32
    %c0_i32_1 = arith.constant 0 : i32
    return %c0_i32, %c0_i32_0 : i32, i32
  }
  func.func @transform_7(%arg0: i32) -> (i32, i32) {
    %c0_i32 = arith.constant 0 : i32
    %c0_i32_0 = arith.constant 0 : i32
    %c0_i32_1 = arith.constant 0 : i32
    return %c0_i32, %c0_i32_0 : i32, i32
  }
  func.func @transform_8(%arg0: i32) -> (i32, i32) {
    %c0_i32 = arith.constant 0 : i32
    %c0_i32_0 = arith.constant 0 : i32
    %c0_i32_1 = arith.constant 0 : i32
    return %c0_i32, %c0_i32_0 : i32, i32
  }
  func.func @transform_9(%arg0: i32) -> (i32, i32) {
    %c0_i32 = arith.constant 0 : i32
    %c0_i32_0 = arith.constant 0 : i32
    return %arg0, %c0_i32 : i32, i32
  }
}

</mosaic_0001>

<llo_original>
// kernel: critic_forward.1
$region0: #{critic_forward.1}
  #allocation0 [shape = 'u32[]', space=smem, size = 0x4, offset = 0x4, fixed_abs, tag = 'smem constant byte address 0x4 - core index']
  #allocation1 [shape = 'u32[144,128]{1,0:T(1,128)}', space=vmem, size = 0x12000, scoped, tag = 'internal scratch']
  #allocation2 [shape = 'f32[1,1]{1,0:T(1,128)S(6)}', space=smem, size = 0x200, scoped, tag = 'scoped memory for critic_forward.1']
  %s0 = inlined_call_operand.hbm [shape: f32[8,16], index: 0, kind: input, shape index: {}]
  %s1 = inlined_call_operand.vmem [shape: f32[8,4], index: 1, kind: input, shape index: {}]
  %s2 = inlined_call_operand.hbm [shape: f32[16,512], index: 2, kind: input, shape index: {}]
  %s3 = inlined_call_operand.vmem [shape: f32[4,512], index: 3, kind: input, shape index: {}]
  %s4 = inlined_call_operand.vmem [shape: f32[1,512], index: 4, kind: input, shape index: {}]
  %s5 = inlined_call_operand.hbm [shape: f32[512,384], index: 5, kind: input, shape index: {}]
  %s6 = inlined_call_operand.vmem [shape: f32[1,384], index: 6, kind: input, shape index: {}]
  %s7 = inlined_call_operand.vmem [shape: f32[1,384], index: 7, kind: input, shape index: {}]
  %s8 = inlined_call_operand.<no memory space> [shape: f32[1,1], index: 8, kind: input, shape index: {}]
  %s9 = inlined_call_operand.vmem [shape: f32[8,1], index: 9, kind: output, shape index: {}]
  %s10 = sld [smem:[#allocation0]]
  $region58: #{critic_forward.1} parent=0
    _
  %s12 = ssub.s32 1, %s10
  %s13 = scalar_select 0, %s12, %s10
  %14 = sst [smem:[#allocation2]] %s8
  $region1: #{critic_forward.1} parent=0
    #allocation3 [shape = 'u8[4096]{0}', space=vmem, size = 0x1000, scoped, tag = 'input window, operand 0, single buffered']
    #allocation4 [shape = 's32[1]{0}', space=sflag, size = 0x4, scoped, tag = 'scoped memory for critic_forward.1']
    #allocation5 [shape = 'u8[32768]{0}', space=vmem, size = 0x8000, scoped, tag = 'input window, operand 2, single buffered']
    #allocation6 [shape = 's32[1]{0}', space=sflag, size = 0x4, scoped, tag = 'scoped memory for critic_forward.1']
    #allocation7 [shape = 'u8[786432]{0}', space=vmem, size = 0xc0000, scoped, tag = 'input window, operand 5, single buffered']
    %15 = vsyncpa [#allocation4], 0
    %16 = vsyncpa [#allocation6], 0
    // Predicated region
    $region2: #{critic_forward.1} parent=1 // pred_check
      _
    $region3: #{critic_forward.1} parent=1 // pred_check_branch
      %18 = sbr.rel (0) target = $region5
    $region4: #{critic_forward.1} parent=1 // pred_region
      %s20 = ssub.s32 128, 128
      %21 = vsyncadd [#allocation4], %s20
      %s23 = sshll.u32 [#allocation3], 4
      %s24 = int_to_ptr.vmem [resolvable:$true] %s23
      %26 = dma.hbm_to_vmem [thread:$0]  %s0, 128, %s24, [#allocation4]
    $region5: #{critic_forward.1} parent=1 // pred_fallthru
      _
    // Predicated region
    $region6: #{critic_forward.1} parent=1 // pred_check
      _
    $region7: #{critic_forward.1} parent=1 // pred_check_branch
      %28 = sbr.rel (0) target = $region9
    $region8: #{critic_forward.1} parent=1 // pred_region
      _
    $region9: #{critic_forward.1} parent=1 // pred_fallthru
      _
    // Predicated region
    $region10: #{critic_forward.1} parent=1 // pred_check
      _
    $region11: #{critic_forward.1} parent=1 // pred_check_branch
      %30 = sbr.rel (0) target = $region13
    $region12: #{critic_forward.1} parent=1 // pred_region
      %s32 = ssub.s32 1024, 1024
      %33 = vsyncadd [#allocation6], %s32
      %s34 = sshll.u32 [#allocation5], 4
      %s35 = int_to_ptr.vmem [resolvable:$true] %s34
      %40 = dma.hbm_to_vmem [thread:$0]  %s2, 1024, %s35, [#allocation6], 512, 512, 32
    $region13: #{critic_forward.1} parent=1 // pred_fallthru
      _
    // Predicated region
    $region14: #{critic_forward.1} parent=1 // pred_check
      _
    $region15: #{critic_forward.1} parent=1 // pred_check_branch
      %42 = sbr.rel (0) target = $region17
    $region16: #{critic_forward.1} parent=1 // pred_region
      _
    $region17: #{critic_forward.1} parent=1 // pred_fallthru
      _
    // Predicated region
    $region18: #{critic_forward.1} parent=1 // pred_check
      _
    $region19: #{critic_forward.1} parent=1 // pred_check_branch
      %44 = sbr.rel (0) target = $region21
    $region20: #{critic_forward.1} parent=1 // pred_region
      _
    $region21: #{critic_forward.1} parent=1 // pred_fallthru
      _
    // Predicated region
    $region22: #{critic_forward.1} parent=1 // pred_check
      _
    $region23: #{critic_forward.1} parent=1 // pred_check_branch
      %46 = sbr.rel (0) target = $region25
    $region24: #{critic_forward.1} parent=1 // pred_region
      %s48 = ssub.s32 24576, 24576
      %49 = vsyncadd [#allocation6], %s48
      %s50 = sshll.u32 [#allocation7], 4
      %s51 = int_to_ptr.vmem [resolvable:$true] %s50
      %56 = dma.hbm_to_vmem [thread:$0]  %s5, 24576, %s51, [#allocation6], 384, 384, 24
    $region25: #{critic_forward.1} parent=1 // pred_fallthru
      _
    // Predicated region
    $region26: #{critic_forward.1} parent=1 // pred_check
      _
    $region27: #{critic_forward.1} parent=1 // pred_check_branch
      %58 = sbr.rel (0) target = $region29
    $region28: #{critic_forward.1} parent=1 // pred_region
      _
    $region29: #{critic_forward.1} parent=1 // pred_fallthru
      _
    // Predicated region
    $region30: #{critic_forward.1} parent=1 // pred_check
      _
    $region31: #{critic_forward.1} parent=1 // pred_check_branch
      %60 = sbr.rel (0) target = $region33
    $region32: #{critic_forward.1} parent=1 // pred_region
      _
    $region33: #{critic_forward.1} parent=1 // pred_fallthru
      _
    // Predicated region
    $region34: #{critic_forward.1} parent=1 // pred_check
      _
    $region35: #{critic_forward.1} parent=1 // pred_check_branch
      %62 = sbr.rel (0) target = $region37
    $region36: #{critic_forward.1} parent=1 // pred_region
      _
    $region37: #{critic_forward.1} parent=1 // pred_fallthru
      _
    // Predicated region
    $region38: #{critic_forward.1} parent=1 // pred_check
      _
    $region39: #{critic_forward.1} parent=1 // pred_check_branch
      %64 = sbr.rel (0) target = $region41
    $region40: #{critic_forward.1} parent=1 // pred_region
      %65 = dma.done [#allocation4], 128
    $region41: #{critic_forward.1} parent=1 // pred_fallthru
      _
    // Predicated region
    $region42: #{critic_forward.1} parent=1 // pred_check
      _
    $region43: #{critic_forward.1} parent=1 // pred_check_branch
      %67 = sbr.rel (0) target = $region45
    $region44: #{critic_forward.1} parent=1 // pred_region
      %68 = dma.done [#allocation6], 1024
    $region45: #{critic_forward.1} parent=1 // pred_fallthru
      _
    // Predicated region
    $region46: #{critic_forward.1} parent=1 // pred_check
      _
    $region47: #{critic_forward.1} parent=1 // pred_check_branch
      %70 = sbr.rel (0) target = $region49
    $region48: #{critic_forward.1} parent=1 // pred_region
      %71 = dma.done [#allocation6], 24576
    $region49: #{critic_forward.1} parent=1 // pred_fallthru
      _
    %v72 = vld [vmem:[#allocation3] sm:$0xff]
    %v73 = vld [vmem:[#allocation5] sm:$0xff]
    %v74 = vld [vmem:[#allocation5 + $0x8] sm:$0xff]
    %v75 = vld [vmem:[#allocation5 + $0x10] sm:$0xff]
    %v76 = vld [vmem:[#allocation5 + $0x18] sm:$0xff]
    %v77 = vld [vmem:[#allocation5 + $0x20] sm:$0xff]
    %v78 = vld [vmem:[#allocation5 + $0x28] sm:$0xff]
    %v79 = vld [vmem:[#allocation5 + $0x30] sm:$0xff]
    %v80 = vld [vmem:[#allocation5 + $0x38] sm:$0xff]
    %v81 = vld [vmem:[%s1] sm:$0xff]
    %v82 = vld [vmem:[%s3] sm:$0xff]
    %v83 = vld [vmem:[%s3 + $0x8] sm:$0xff]
    %v86 = vcombine.high %v82, %v82
    %v87 = vcombine.high %v83, %v83
    %vm88 = vcmask 31744
    %v90 = vsel %vm88, %v81, 0
    %vm92 = vcmask 1043456
    %v93 = vsel %vm92, %v82, 0
    %v95 = vsel %vm92, %v86, 0
    %v97 = vsel %vm92, %v83, 0
    %v99 = vsel %vm92, %v87, 0
    %101 = vmatprep.subr.mxu0 0.0
    %102 = vmatpush1.msra.mxu0 0.0
    %103 = vmatprep.subr.mxu0 0.0
    %104 = vmatpush1.msra.mxu0 0.0
    %105 = vmatprep.subr.mxu0 0.0
    %106 = vmatpush1.msra.mxu0 0.0
    %107 = vmatprep.subr.mxu0 0.0
    %108 = vmatpush1.msra.mxu0 0.0
    %109 = vmatprep.subr.mxu0 0.0
    %110 = vmatpush1.msra.mxu0 0.0
    %111 = vmatprep.subr.mxu0 0.0
    %112 = vmatpush1.msra.mxu0 0.0
    %113 = vmatprep.subr.mxu0 0.0
    %114 = vmatpush1.msra.mxu0 0.0
    %115 = vmatprep.subr.mxu0 0.0
    %116 = vmatpush1.msra.mxu0 0.0
    %117 = vmatprep.subr.mxu0 0.0
    %118 = vmatpush1.msra.mxu0 0.0
    %119 = vmatprep.subr.mxu0 0.0
    %120 = vmatpush1.msra.mxu0 0.0
    %121 = vmatprep.subr.mxu0 0.0
    %122 = vmatpush1.msra.mxu0 0.0
    %123 = vmatprep.subr.mxu0 0.0
    %124 = vmatpush1.msra.mxu0 0.0
    %125 = vmatprep.subr.mxu0 0.0
    %126 = vmatpush1.msra.mxu0 0.0
    %127 = vmatprep.subr.mxu0 0.0
    %128 = vmatpush1.msra.mxu0 0.0
    %129 = vmatprep.subr.mxu0 0.0
    %130 = vmatpush1.msra.mxu0 0.0
    %131 = vmatprep.subr.mxu0 %v95
    %132 = vmatpush1.msra.mxu0 %v93
    %133 = vmatprep.subr.mxu0 0.0
    %134 = vmatpush2.msra.mxu0 0.0
    %135 = vmatprep.subr.mxu0 0.0
    %136 = vmatpush2.msra.mxu0 0.0
    %137 = vmatprep.subr.mxu0 0.0
    %138 = vmatpush2.msra.mxu0 0.0
    %139 = vmatprep.subr.mxu0 0.0
    %140 = vmatpush2.msra.mxu0 0.0
    %141 = vmatprep.subr.mxu0 0.0
    %142 = vmatpush2.msra.mxu0 0.0
    %143 = vmatprep.subr.mxu0 0.0
    %144 = vmatpush2.msra.mxu0 0.0
    %145 = vmatprep.subr.mxu0 0.0
    %146 = vmatpush2.msra.mxu0 0.0
    %147 = vmatprep.subr.mxu0 0.0
    %148 = vmatpush2.msra.mxu0 0.0
    %149 = vmatprep.subr.mxu0 0.0
    %150 = vmatpush2.msra.mxu0 0.0
    %151 = vmatprep.subr.mxu0 0.0
    %152 = vmatpush2.msra.mxu0 0.0
    %153 = vmatprep.subr.mxu0 0.0
    %154 = vmatpush2.msra.mxu0 0.0
    %155 = vmatprep.subr.mxu0 0.0
    %156 = vmatpush2.msra.mxu0 0.0
    %157 = vmatprep.subr.mxu0 0.0
    %158 = vmatpush2.msra.mxu0 0.0
    %159 = vmatprep.subr.mxu0 0.0
    %160 = vmatpush2.msra.mxu0 0.0
    %161 = vmatprep.subr.mxu0 0.0
    %162 = vmatpush2.msra.mxu0 0.0
    %163 = vmatprep.subr.mxu0 0.0
    %164 = vmatpush2.msra.mxu0 0.0
    %165 = vmatprep.mubr.f32.mxu0 0.0
    %166 = vmatmul.mubr.f32.gmra.mxu0 %v90
    %v167 = vpop.f32.mrf.mxu0
    %v168 = vadd.f32 0.0, %v167
    %v169 = vpop.f32.mrf.mxu0
    %v170 = vadd.f32 0.0, %v169
    %171 = vdwg.mxu0
    %172 = vmatprep.subr.mxu0 0.0
    %173 = vmatpush1.msra.mxu0 0.0
    %174 = vmatprep.subr.mxu0 0.0
    %175 = vmatpush1.msra.mxu0 0.0
    %176 = vmatprep.subr.mxu0 0.0
    %177 = vmatpush1.msra.mxu0 0.0
    %178 = vmatprep.subr.mxu0 0.0
    %179 = vmatpush1.msra.mxu0 0.0
    %180 = vmatprep.subr.mxu0 0.0
    %181 = vmatpush1.msra.mxu0 0.0
    %182 = vmatprep.subr.mxu0 0.0
    %183 = vmatpush1.msra.mxu0 0.0
    %184 = vmatprep.subr.mxu0 0.0
    %185 = vmatpush1.msra.mxu0 0.0
    %186 = vmatprep.subr.mxu0 0.0
    %187 = vmatpush1.msra.mxu0 0.0
    %188 = vmatprep.subr.mxu0 0.0
    %189 = vmatpush1.msra.mxu0 0.0
    %190 = vmatprep.subr.mxu0 0.0
    %191 = vmatpush1.msra.mxu0 0.0
    %192 = vmatprep.subr.mxu0 0.0
    %193 = vmatpush1.msra.mxu0 0.0
    %194 = vmatprep.subr.mxu0 0.0
    %195 = vmatpush1.msra.mxu0 0.0
    %196 = vmatprep.subr.mxu0 0.0
    %197 = vmatpush1.msra.mxu0 0.0
    %198 = vmatprep.subr.mxu0 0.0
    %199 = vmatpush1.msra.mxu0 0.0
    %200 = vmatprep.subr.mxu0 0.0
    %201 = vmatpush1.msra.mxu0 0.0
    %202 = vmatprep.subr.mxu0 %v99
    %203 = vmatpush1.msra.mxu0 %v97
    %204 = vmatprep.subr.mxu0 0.0
    %205 = vmatpush2.msra.mxu0 0.0
    %206 = vmatprep.subr.mxu0 0.0
    %207 = vmatpush2.msra.mxu0 0.0
    %208 = vmatprep.subr.mxu0 0.0
    %209 = vmatpush2.msra.mxu0 0.0
    %210 = vmatprep.subr.mxu0 0.0
    %211 = vmatpush2.msra.mxu0 0.0
    %212 = vmatprep.subr.mxu0 0.0
    %213 = vmatpush2.msra.mxu0 0.0
    %214 = vmatprep.subr.mxu0 0.0
    %215 = vmatpush2.msra.mxu0 0.0
    %216 = vmatprep.subr.mxu0 0.0
    %217 = vmatpush2.msra.mxu0 0.0
    %218 = vmatprep.subr.mxu0 0.0
    %219 = vmatpush2.msra.mxu0 0.0
    %220 = vmatprep.subr.mxu0 0.0
    %221 = vmatpush2.msra.mxu0 0.0
    %222 = vmatprep.subr.mxu0 0.0
    %223 = vmatpush2.msra.mxu0 0.0
    %224 = vmatprep.subr.mxu0 0.0
    %225 = vmatpush2.msra.mxu0 0.0
    %226 = vmatprep.subr.mxu0 0.0
    %227 = vmatpush2.msra.mxu0 0.0
    %228 = vmatprep.subr.mxu0 0.0
    %229 = vmatpush2.msra.mxu0 0.0
    %230 = vmatprep.subr.mxu0 0.0
    %231 = vmatpush2.msra.mxu0 0.0
    %232 = vmatprep.subr.mxu0 0.0
    %233 = vmatpush2.msra.mxu0 0.0
    %234 = vmatprep.subr.mxu0 0.0
    %235 = vmatpush2.msra.mxu0 0.0
    %236 = vmatprep.mubr.f32.mxu0 0.0
    %237 = vmatmul.mubr.f32.gmra.mxu0 %v90
    %v238 = vpop.f32.mrf.mxu0
    %v239 = vadd.f32 0.0, %v238
    %v240 = vpop.f32.mrf.mxu0
    %v241 = vadd.f32 0.0, %v240
    %242 = vdwg.mxu0
    %vm243 = vcmask 130048
    %v245 = vsel %vm243, %v72, 0
    %247 = vmatprep.subr.mxu0 0.0
    %248 = vmatpush1.msra.mxu0 0.0
    %249 = vmatprep.subr.mxu0 0.0
    %250 = vmatpush1.msra.mxu0 0.0
    %251 = vmatprep.subr.mxu0 0.0
    %252 = vmatpush1.msra.mxu0 0.0
    %253 = vmatprep.subr.mxu0 0.0
    %254 = vmatpush1.msra.mxu0 0.0
    %255 = vmatprep.subr.mxu0 0.0
    %256 = vmatpush1.msra.mxu0 0.0
    %257 = vmatprep.subr.mxu0 0.0
    %258 = vmatpush1.msra.mxu0 0.0
    %259 = vmatprep.subr.mxu0 0.0
    %260 = vmatpush1.msra.mxu0 0.0
    %261 = vmatprep.subr.mxu0 0.0
    %262 = vmatpush1.msra.mxu0 0.0
    %263 = vmatprep.subr.mxu0 0.0
    %264 = vmatpush1.msra.mxu0 0.0
    %265 = vmatprep.subr.mxu0 0.0
    %266 = vmatpush1.msra.mxu0 0.0
    %267 = vmatprep.subr.mxu0 0.0
    %268 = vmatpush1.msra.mxu0 0.0
    %269 = vmatprep.subr.mxu0 0.0
    %270 = vmatpush1.msra.mxu0 0.0
    %271 = vmatprep.subr.mxu0 0.0
    %272 = vmatpush1.msra.mxu0 0.0
    %273 = vmatprep.subr.mxu0 0.0
    %274 = vmatpush1.msra.mxu0 0.0
    %275 = vmatprep.subr.mxu0 %v78
    %276 = vmatpush1.msra.mxu0 %v77
    %277 = vmatprep.subr.mxu0 %v74
    %278 = vmatpush1.msra.mxu0 %v73
    %279 = vmatprep.subr.mxu0 0.0
    %280 = vmatpush2.msra.mxu0 0.0
    %281 = vmatprep.subr.mxu0 0.0
    %282 = vmatpush2.msra.mxu0 0.0
    %283 = vmatprep.subr.mxu0 0.0
    %284 = vmatpush2.msra.mxu0 0.0
    %285 = vmatprep.subr.mxu0 0.0
    %286 = vmatpush2.msra.mxu0 0.0
    %287 = vmatprep.subr.mxu0 0.0
    %288 = vmatpush2.msra.mxu0 0.0
    %289 = vmatprep.subr.mxu0 0.0
    %290 = vmatpush2.msra.mxu0 0.0
    %291 = vmatprep.subr.mxu0 0.0
    %292 = vmatpush2.msra.mxu0 0.0
    %293 = vmatprep.subr.mxu0 0.0
    %294 = vmatpush2.msra.mxu0 0.0
    %295 = vmatprep.subr.mxu0 0.0
    %296 = vmatpush2.msra.mxu0 0.0
    %297 = vmatprep.subr.mxu0 0.0
    %298 = vmatpush2.msra.mxu0 0.0
    %299 = vmatprep.subr.mxu0 0.0
    %300 = vmatpush2.msra.mxu0 0.0
    %301 = vmatprep.subr.mxu0 0.0
    %302 = vmatpush2.msra.mxu0 0.0
    %303 = vmatprep.subr.mxu0 0.0
    %304 = vmatpush2.msra.mxu0 0.0
    %305 = vmatprep.subr.mxu0 0.0
    %306 = vmatpush2.msra.mxu0 0.0
    %307 = vmatprep.subr.mxu0 0.0
    %308 = vmatpush2.msra.mxu0 0.0
    %309 = vmatprep.subr.mxu0 0.0
    %310 = vmatpush2.msra.mxu0 0.0
    %311 = vmatprep.mubr.f32.mxu0 0.0
    %312 = vmatmul.mubr.f32.gmra.mxu0 %v245
    %v313 = vpop.f32.mrf.mxu0
    %v314 = vadd.f32 %v168, %v313
    %v315 = vpop.f32.mrf.mxu0
    %v316 = vadd.f32 %v170, %v315
    %317 = vdwg.mxu0
    %318 = vmatprep.subr.mxu0 0.0
    %319 = vmatpush1.msra.mxu0 0.0
    %320 = vmatprep.subr.mxu0 0.0
    %321 = vmatpush1.msra.mxu0 0.0
    %322 = vmatprep.subr.mxu0 0.0
    %323 = vmatpush1.msra.mxu0 0.0
    %324 = vmatprep.subr.mxu0 0.0
    %325 = vmatpush1.msra.mxu0 0.0
    %326 = vmatprep.subr.mxu0 0.0
    %327 = vmatpush1.msra.mxu0 0.0
    %328 = vmatprep.subr.mxu0 0.0
    %329 = vmatpush1.msra.mxu0 0.0
    %330 = vmatprep.subr.mxu0 0.0
    %331 = vmatpush1.msra.mxu0 0.0
    %332 = vmatprep.subr.mxu0 0.0
    %333 = vmatpush1.msra.mxu0 0.0
    %334 = vmatprep.subr.mxu0 0.0
    %335 = vmatpush1.msra.mxu0 0.0
    %336 = vmatprep.subr.mxu0 0.0
    %337 = vmatpush1.msra.mxu0 0.0
    %338 = vmatprep.subr.mxu0 0.0
    %339 = vmatpush1.msra.mxu0 0.0
    %340 = vmatprep.subr.mxu0 0.0
    %341 = vmatpush1.msra.mxu0 0.0
    %342 = vmatprep.subr.mxu0 0.0
    %343 = vmatpush1.msra.mxu0 0.0
    %344 = vmatprep.subr.mxu0 0.0
    %345 = vmatpush1.msra.mxu0 0.0
    %346 = vmatprep.subr.mxu0 %v80
    %347 = vmatpush1.msra.mxu0 %v79
    %348 = vmatprep.subr.mxu0 %v76
    %349 = vmatpush1.msra.mxu0 %v75
    %350 = vmatprep.subr.mxu0 0.0
    %351 = vmatpush2.msra.mxu0 0.0
    %352 = vmatprep.subr.mxu0 0.0
    %353 = vmatpush2.msra.mxu0 0.0
    %354 = vmatprep.subr.mxu0 0.0
    %355 = vmatpush2.msra.mxu0 0.0
    %356 = vmatprep.subr.mxu0 0.0
    %357 = vmatpush2.msra.mxu0 0.0
    %358 = vmatprep.subr.mxu0 0.0
    %359 = vmatpush2.msra.mxu0 0.0
    %360 = vmatprep.subr.mxu0 0.0
    %361 = vmatpush2.msra.mxu0 0.0
    %362 = vmatprep.subr.mxu0 0.0
    %363 = vmatpush2.msra.mxu0 0.0
    %364 = vmatprep.subr.mxu0 0.0
    %365 = vmatpush2.msra.mxu0 0.0
    %366 = vmatprep.subr.mxu0 0.0
    %367 = vmatpush2.msra.mxu0 0.0
    %368 = vmatprep.subr.mxu0 0.0
    %369 = vmatpush2.msra.mxu0 0.0
    %370 = vmatprep.subr.mxu0 0.0
    %371 = vmatpush2.msra.mxu0 0.0
    %372 = vmatprep.subr.mxu0 0.0
    %373 = vmatpush2.msra.mxu0 0.0
    %374 = vmatprep.subr.mxu0 0.0
    %375 = vmatpush2.msra.mxu0 0.0
    %376 = vmatprep.subr.mxu0 0.0
    %377 = vmatpush2.msra.mxu0 0.0
    %378 = vmatprep.subr.mxu0 0.0
    %379 = vmatpush2.msra.mxu0 0.0
    %380 = vmatprep.subr.mxu0 0.0
    %381 = vmatpush2.msra.mxu0 0.0
    %382 = vmatprep.mubr.f32.mxu0 0.0
    %383 = vmatmul.mubr.f32.gmra.mxu0 %v245
    %v384 = vpop.f32.mrf.mxu0
    %v385 = vadd.f32 %v239, %v384
    %v386 = vpop.f32.mrf.mxu0
    %v387 = vadd.f32 %v241, %v386
    %388 = vdwg.mxu0
    %v389 = vld [vmem:[%s4] sm:$0xf]
    %v391 = vlaneseq
    %v392 = vshrl.u32 %v391, 7
    %v393 = vsub.s32 0, %v392
    %v394 = vrot.slane %v389, %v393
    %v395 = vlaneseq
    %v396 = vshrl.u32 %v395, 7
    %v397 = vsub.s32 1, %v396
    %v398 = vrot.slane %v389, %v397
    %v399 = vlaneseq
    %v400 = vshrl.u32 %v399, 7
    %v401 = vsub.s32 2, %v400
    %v402 = vrot.slane %v389, %v401
    %v403 = vlaneseq
    %v404 = vshrl.u32 %v403, 7
    %v405 = vsub.s32 3, %v404
    %v406 = vrot.slane %v389, %v405
    %v411 = vadd.f32 %v314, %v394
    %v412 = vadd.f32 %v316, %v398
    %v413 = vadd.f32 %v385, %v402
    %v414 = vadd.f32 %v387, %v406
    %v415 = vmax.f32 %v411, 0.0
    %v416 = vmax.f32 %v412, 0.0
    %v417 = vmax.f32 %v413, 0.0
    %v418 = vmax.f32 %v414, 0.0
    %v419 = vld [vmem:[#allocation7] sm:$0xff]
    %v420 = vld [vmem:[#allocation7 + $0x8] sm:$0xff]
    %v421 = vld [vmem:[#allocation7 + $0x10] sm:$0xff]
    %v422 = vld [vmem:[#allocation7 + $0x18] sm:$0xff]
    %v423 = vld [vmem:[#allocation7 + $0x20] sm:$0xff]
    %v424 = vld [vmem:[#allocation7 + $0x28] sm:$0xff]
    %v425 = vld [vmem:[#allocation7 + $0x30] sm:$0xff]
    %v426 = vld [vmem:[#allocation7 + $0x38] sm:$0xff]
    %v427 = vld [vmem:[#allocation7 + $0x40] sm:$0xff]
    %v428 = vld [vmem:[#allocation7 + $0x48] sm:$0xff]
    %v429 = vld [vmem:[#allocation7 + $0x50] sm:$0xff]
    %v430 = vld [vmem:[#allocation7 + $0x58] sm:$0xff]
    %v431 = vld [vmem:[#allocation7 + $0x60] sm:$0xff]
    %v432 = vld [vmem:[#allocation7 + $0x68] sm:$0xff]
    %v433 = vld [vmem:[#allocation7 + $0x70] sm:$0xff]
    %v434 = vld [vmem:[#allocation7 + $0x78] sm:$0xff]
    %v435 = vld [vmem:[#allocation7 + $0x80] sm:$0xff]
    %v436 = vld [vmem:[#allocation7 + $0x88] sm:$0xff]
    %v437 = vld [vmem:[#allocation7 + $0x90] sm:$0xff]
    %v438 = vld [vmem:[#allocation7 + $0x98] sm:$0xff]
    %v439 = vld [vmem:[#allocation7 + $0xa0] sm:$0xff]
    %v440 = vld [vmem:[#allocation7 + $0xa8] sm:$0xff]
    %v441 = vld [vmem:[#allocation7 + $0xb0] sm:$0xff]
    %v442 = vld [vmem:[#allocation7 + $0xb8] sm:$0xff]
    %v443 = vld [vmem:[#allocation7 + $0xc0] sm:$0xff]
    %v444 = vld [vmem:[#allocation7 + $0xc8] sm:$0xff]
    %v445 = vld [vmem:[#allocation7 + $0xd0] sm:$0xff]
    %v446 = vld [vmem:[#allocation7 + $0xd8] sm:$0xff]
    %v447 = vld [vmem:[#allocation7 + $0xe0] sm:$0xff]
    %v448 = vld [vmem:[#allocation7 + $0xe8] sm:$0xff]
    %v449 = vld [vmem:[#allocation7 + $0xf0] sm:$0xff]
    %v450 = vld [vmem:[#allocation7 + $0xf8] sm:$0xff]
    %v451 = vld [vmem:[#allocation7 + $0x100] sm:$0xff]
    %v452 = vld [vmem:[#allocation7 + $0x108] sm:$0xff]
    %v453 = vld [vmem:[#allocation7 + $0x110] sm:$0xff]
    %v454 = vld [vmem:[#allocation7 + $0x118] sm:$0xff]
    %v455 = vld [vmem:[#allocation7 + $0x120] sm:$0xff]
    %v456 = vld [vmem:[#allocation7 + $0x128] sm:$0xff]
    %v457 = vld [vmem:[#allocation7 + $0x130] sm:$0xff]
    %v458 = vld [vmem:[#allocation7 + $0x138] sm:$0xff]
    %v459 = vld [vmem:[#allocation7 + $0x140] sm:$0xff]
    %v460 = vld [vmem:[#allocation7 + $0x148] sm:$0xff]
    %v461 = vld [vmem:[#allocation7 + $0x150] sm:$0xff]
    %v462 = vld [vmem:[#allocation7 + $0x158] sm:$0xff]
    %v463 = vld [vmem:[#allocation7 + $0x160] sm:$0xff]
    %v464 = vld [vmem:[#allocation7 + $0x168] sm:$0xff]
    %v465 = vld [vmem:[#allocation7 + $0x170] sm:$0xff]
    %v466 = vld [vmem:[#allocation7 + $0x178] sm:$0xff]
    %v467 = vld [vmem:[#allocation7 + $0x180] sm:$0xff]
    %v468 = vld [vmem:[#allocation7 + $0x188] sm:$0xff]
    %v469 = vld [vmem:[#allocation7 + $0x190] sm:$0xff]
    %v470 = vld [vmem:[#allocation7 + $0x198] sm:$0xff]
    %v471 = vld [vmem:[#allocation7 + $0x1a0] sm:$0xff]
    %v472 = vld [vmem:[#allocation7 + $0x1a8] sm:$0xff]
    %v473 = vld [vmem:[#allocation7 + $0x1b0] sm:$0xff]
    %v474 = vld [vmem:[#allocation7 + $0x1b8] sm:$0xff]
    %v475 = vld [vmem:[#allocation7 + $0x1c0] sm:$0xff]
    %v476 = vld [vmem:[#allocation7 + $0x1c8] sm:$0xff]
    %v477 = vld [vmem:[#allocation7 + $0x1d0] sm:$0xff]
    %v478 = vld [vmem:[#allocation7 + $0x1d8] sm:$0xff]
    %v479 = vld [vmem:[#allocation7 + $0x1e0] sm:$0xff]
    %v480 = vld [vmem:[#allocation7 + $0x1e8] sm:$0xff]
    %v481 = vld [vmem:[#allocation7 + $0x1f0] sm:$0xff]
    %v482 = vld [vmem:[#allocation7 + $0x1f8] sm:$0xff]
    %v483 = vld [vmem:[#allocation7 + $0x200] sm:$0xff]
    %v484 = vld [vmem:[#allocation7 + $0x208] sm:$0xff]
    %v485 = vld [vmem:[#allocation7 + $0x210] sm:$0xff]
    %v486 = vld [vmem:[#allocation7 + $0x218] sm:$0xff]
    %v487 = vld [vmem:[#allocation7 + $0x220] sm:$0xff]
    %v488 = vld [vmem:[#allocation7 + $0x228] sm:$0xff]
    %v489 = vld [vmem:[#allocation7 + $0x230] sm:$0xff]
    %v490 = vld [vmem:[#allocation7 + $0x238] sm:$0xff]
    %v491 = vld [vmem:[#allocation7 + $0x240] sm:$0xff]
    %v492 = vld [vmem:[#allocation7 + $0x248] sm:$0xff]
    %v493 = vld [vmem:[#allocation7 + $0x250] sm:$0xff]
    %v494 = vld [vmem:[#allocation7 + $0x258] sm:$0xff]
    %v495 = vld [vmem:[#allocation7 + $0x260] sm:$0xff]
    %v496 = vld [vmem:[#allocation7 + $0x268] sm:$0xff]
    %v497 = vld [vmem:[#allocation7 + $0x270] sm:$0xff]
    %v498 = vld [vmem:[#allocation7 + $0x278] sm:$0xff]
    %v499 = vld [vmem:[#allocation7 + $0x280] sm:$0xff]
    %v500 = vld [vmem:[#allocation7 + $0x288] sm:$0xff]
    %v501 = vld [vmem:[#allocation7 + $0x290] sm:$0xff]
    %v502 = vld [vmem:[#allocation7 + $0x298] sm:$0xff]
    %v503 = vld [vmem:[#allocation7 + $0x2a0] sm:$0xff]
    %v504 = vld [vmem:[#allocation7 + $0x2a8] sm:$0xff]
    %v505 = vld [vmem:[#allocation7 + $0x2b0] sm:$0xff]
    %v506 = vld [vmem:[#allocation7 + $0x2b8] sm:$0xff]
    %v507 = vld [vmem:[#allocation7 + $0x2c0] sm:$0xff]
    %v508 = vld [vmem:[#allocation7 + $0x2c8] sm:$0xff]
    %v509 = vld [vmem:[#allocation7 + $0x2d0] sm:$0xff]
    %v510 = vld [vmem:[#allocation7 + $0x2d8] sm:$0xff]
    %v511 = vld [vmem:[#allocation7 + $0x2e0] sm:$0xff]
    %v512 = vld [vmem:[#allocation7 + $0x2e8] sm:$0xff]
    %v513 = vld [vmem:[#allocation7 + $0x2f0] sm:$0xff]
    %v514 = vld [vmem:[#allocation7 + $0x2f8] sm:$0xff]
    %v515 = vld [vmem:[#allocation7 + $0x300] sm:$0xff]
    %v516 = vld [vmem:[#allocation7 + $0x308] sm:$0xff]
    %v517 = vld [vmem:[#allocation7 + $0x310] sm:$0xff]
    %v518 = vld [vmem:[#allocation7 + $0x318] sm:$0xff]
    %v519 = vld [vmem:[#allocation7 + $0x320] sm:$0xff]
    %v520 = vld [vmem:[#allocation7 + $0x328] sm:$0xff]
    %v521 = vld [vmem:[#allocation7 + $0x330] sm:$0xff]
    %v522 = vld [vmem:[#allocation7 + $0x338] sm:$0xff]
    %v523 = vld [vmem:[#allocation7 + $0x340] sm:$0xff]
    %v524 = vld [vmem:[#allocation7 + $0x348] sm:$0xff]
    %v525 = vld [vmem:[#allocation7 + $0x350] sm:$0xff]
    %v526 = vld [vmem:[#allocation7 + $0x358] sm:$0xff]
    %v527 = vld [vmem:[#allocation7 + $0x360] sm:$0xff]
    %v528 = vld [vmem:[#allocation7 + $0x368] sm:$0xff]
    %v529 = vld [vmem:[#allocation7 + $0x370] sm:$0xff]
    %v530 = vld [vmem:[#allocation7 + $0x378] sm:$0xff]
    %v531 = vld [vmem:[#allocation7 + $0x380] sm:$0xff]
    %v532 = vld [vmem:[#allocation7 + $0x388] sm:$0xff]
    %v533 = vld [vmem:[#allocation7 + $0x390] sm:$0xff]
    %v534 = vld [vmem:[#allocation7 + $0x398] sm:$0xff]
    %v535 = vld [vmem:[#allocation7 + $0x3a0] sm:$0xff]
    %v536 = vld [vmem:[#allocation7 + $0x3a8] sm:$0xff]
    %v537 = vld [vmem:[#allocation7 + $0x3b0] sm:$0xff]
    %v538 = vld [vmem:[#allocation7 + $0x3b8] sm:$0xff]
    %v539 = vld [vmem:[#allocation7 + $0x3c0] sm:$0xff]
    %v540 = vld [vmem:[#allocation7 + $0x3c8] sm:$0xff]
    %v541 = vld [vmem:[#allocation7 + $0x3d0] sm:$0xff]
    %v542 = vld [vmem:[#allocation7 + $0x3d8] sm:$0xff]
    %v543 = vld [vmem:[#allocation7 + $0x3e0] sm:$0xff]
    %v544 = vld [vmem:[#allocation7 + $0x3e8] sm:$0xff]
    %v545 = vld [vmem:[#allocation7 + $0x3f0] sm:$0xff]
    %v546 = vld [vmem:[#allocation7 + $0x3f8] sm:$0xff]
    %v547 = vld [vmem:[#allocation7 + $0x400] sm:$0xff]
    %v548 = vld [vmem:[#allocation7 + $0x408] sm:$0xff]
    %v549 = vld [vmem:[#allocation7 + $0x410] sm:$0xff]
    %v550 = vld [vmem:[#allocation7 + $0x418] sm:$0xff]
    %v551 = vld [vmem:[#allocation7 + $0x420] sm:$0xff]
    %v552 = vld [vmem:[#allocation7 + $0x428] sm:$0xff]
    %v553 = vld [vmem:[#allocation7 + $0x430] sm:$0xff]
    %v554 = vld [vmem:[#allocation7 + $0x438] sm:$0xff]
    %v555 = vld [vmem:[#allocation7 + $0x440] sm:$0xff]
    %v556 = vld [vmem:[#allocation7 + $0x448] sm:$0xff]
    %v557 = vld [vmem:[#allocation7 + $0x450] sm:$0xff]
    %v558 = vld [vmem:[#allocation7 + $0x458] sm:$0xff]
    %v559 = vld [vmem:[#allocation7 + $0x460] sm:$0xff]
    %v560 = vld [vmem:[#allocation7 + $0x468] sm:$0xff]
    %v561 = vld [vmem:[#allocation7 + $0x470] sm:$0xff]
    %v562 = vld [vmem:[#allocation7 + $0x478] sm:$0xff]
    %v563 = vld [vmem:[#allocation7 + $0x480] sm:$0xff]
    %v564 = vld [vmem:[#allocation7 + $0x488] sm:$0xff]
    %v565 = vld [vmem:[#allocation7 + $0x490] sm:$0xff]
    %v566 = vld [vmem:[#allocation7 + $0x498] sm:$0xff]
    %v567 = vld [vmem:[#allocation7 + $0x4a0] sm:$0xff]
    %v568 = vld [vmem:[#allocation7 + $0x4a8] sm:$0xff]
    %v569 = vld [vmem:[#allocation7 + $0x4b0] sm:$0xff]
    %v570 = vld [vmem:[#allocation7 + $0x4b8] sm:$0xff]
    %v571 = vld [vmem:[#allocation7 + $0x4c0] sm:$0xff]
    %v572 = vld [vmem:[#allocation7 + $0x4c8] sm:$0xff]
    %v573 = vld [vmem:[#allocation7 + $0x4d0] sm:$0xff]
    %v574 = vld [vmem:[#allocation7 + $0x4d8] sm:$0xff]
    %v575 = vld [vmem:[#allocation7 + $0x4e0] sm:$0xff]
    %v576 = vld [vmem:[#allocation7 + $0x4e8] sm:$0xff]
    %v577 = vld [vmem:[#allocation7 + $0x4f0] sm:$0xff]
    %v578 = vld [vmem:[#allocation7 + $0x4f8] sm:$0xff]
    %v579 = vld [vmem:[#allocation7 + $0x500] sm:$0xff]
    %v580 = vld [vmem:[#allocation7 + $0x508] sm:$0xff]
    %v581 = vld [vmem:[#allocation7 + $0x510] sm:$0xff]
    %v582 = vld [vmem:[#allocation7 + $0x518] sm:$0xff]
    %v583 = vld [vmem:[#allocation7 + $0x520] sm:$0xff]
    %v584 = vld [vmem:[#allocation7 + $0x528] sm:$0xff]
    %v585 = vld [vmem:[#allocation7 + $0x530] sm:$0xff]
    %v586 = vld [vmem:[#allocation7 + $0x538] sm:$0xff]
    %v587 = vld [vmem:[#allocation7 + $0x540] sm:$0xff]
    %v588 = vld [vmem:[#allocation7 + $0x548] sm:$0xff]
    %v589 = vld [vmem:[#allocation7 + $0x550] sm:$0xff]
    %v590 = vld [vmem:[#allocation7 + $0x558] sm:$0xff]
    %v591 = vld [vmem:[#allocation7 + $0x560] sm:$0xff]
    %v592 = vld [vmem:[#allocation7 + $0x568] sm:$0xff]
    %v593 = vld [vmem:[#allocation7 + $0x570] sm:$0xff]
    %v594 = vld [vmem:[#allocation7 + $0x578] sm:$0xff]
    %v595 = vld [vmem:[#allocation7 + $0x580] sm:$0xff]
    %v596 = vld [vmem:[#allocation7 + $0x588] sm:$0xff]
    %v597 = vld [vmem:[#allocation7 + $0x590] sm:$0xff]
    %v598 = vld [vmem:[#allocation7 + $0x598] sm:$0xff]
    %v599 = vld [vmem:[#allocation7 + $0x5a0] sm:$0xff]
    %v600 = vld [vmem:[#allocation7 + $0x5a8] sm:$0xff]
    %v601 = vld [vmem:[#allocation7 + $0x5b0] sm:$0xff]
    %v602 = vld [vmem:[#allocation7 + $0x5b8] sm:$0xff]
    %v603 = vld [vmem:[#allocation7 + $0x5c0] sm:$0xff]
    %v604 = vld [vmem:[#allocation7 + $0x5c8] sm:$0xff]
    %v605 = vld [vmem:[#allocation7 + $0x5d0] sm:$0xff]
    %v606 = vld [vmem:[#allocation7 + $0x5d8] sm:$0xff]
    %v607 = vld [vmem:[#allocation7 + $0x5e0] sm:$0xff]
    %v608 = vld [vmem:[#allocation7 + $0x5e8] sm:$0xff]
    %v609 = vld [vmem:[#allocation7 + $0x5f0] sm:$0xff]
    %v610 = vld [vmem:[#allocation7 + $0x5f8] sm:$0xff]
    %v611 = vld [vmem:[%s6] sm:$0x7]
    %v613 = vlaneseq
    %v614 = vshrl.u32 %v613, 7
    %v615 = vsub.s32 0, %v614
    %v616 = vrot.slane %v611, %v615
    %v617 = vlaneseq
    %v618 = vshrl.u32 %v617, 7
    %v619 = vsub.s32 1, %v618
    %v620 = vrot.slane %v611, %v619
    %v621 = vlaneseq
    %v622 = vshrl.u32 %v621, 7
    %v623 = vsub.s32 2, %v622
    %v624 = vrot.slane %v611, %v623
    %628 = vmatprep.subr.mxu0 %v465
    %629 = vmatpush1.msra.mxu0 %v464
    %630 = vmatprep.subr.mxu0 %v462
    %631 = vmatpush1.msra.mxu0 %v461
    %632 = vmatprep.subr.mxu0 %v459
    %633 = vmatpush1.msra.mxu0 %v458
    %634 = vmatprep.subr.mxu0 %v456
    %635 = vmatpush1.msra.mxu0 %v455
    %636 = vmatprep.subr.mxu0 %v453
    %637 = vmatpush1.msra.mxu0 %v452
    %638 = vmatprep.subr.mxu0 %v450
    %639 = vmatpush1.msra.mxu0 %v449
    %640 = vmatprep.subr.mxu0 %v447
    %641 = vmatpush1.msra.mxu0 %v446
    %642 = vmatprep.subr.mxu0 %v444
    %643 = vmatpush1.msra.mxu0 %v443
    %644 = vmatprep.subr.mxu0 %v441
    %645 = vmatpush1.msra.mxu0 %v440
    %646 = vmatprep.subr.mxu0 %v438
    %647 = vmatpush1.msra.mxu0 %v437
    %648 = vmatprep.subr.mxu0 %v435
    %649 = vmatpush1.msra.mxu0 %v434
    %650 = vmatprep.subr.mxu0 %v432
    %651 = vmatpush1.msra.mxu0 %v431
    %652 = vmatprep.subr.mxu0 %v429
    %653 = vmatpush1.msra.mxu0 %v428
    %654 = vmatprep.subr.mxu0 %v426
    %655 = vmatpush1.msra.mxu0 %v425
    %656 = vmatprep.subr.mxu0 %v423
    %657 = vmatpush1.msra.mxu0 %v422
    %658 = vmatprep.subr.mxu0 %v420
    %659 = vmatpush1.msra.mxu0 %v419
    %660 = vmatprep.subr.mxu0 %v513
    %661 = vmatpush2.msra.mxu0 %v512
    %662 = vmatprep.subr.mxu0 %v510
    %663 = vmatpush2.msra.mxu0 %v509
    %664 = vmatprep.subr.mxu0 %v507
    %665 = vmatpush2.msra.mxu0 %v506
    %666 = vmatprep.subr.mxu0 %v504
    %667 = vmatpush2.msra.mxu0 %v503
    %668 = vmatprep.subr.mxu0 %v501
    %669 = vmatpush2.msra.mxu0 %v500
    %670 = vmatprep.subr.mxu0 %v498
    %671 = vmatpush2.msra.mxu0 %v497
    %672 = vmatprep.subr.mxu0 %v495
    %673 = vmatpush2.msra.mxu0 %v494
    %674 = vmatprep.subr.mxu0 %v492
    %675 = vmatpush2.msra.mxu0 %v491
    %676 = vmatprep.subr.mxu0 %v489
    %677 = vmatpush2.msra.mxu0 %v488
    %678 = vmatprep.subr.mxu0 %v486
    %679 = vmatpush2.msra.mxu0 %v485
    %680 = vmatprep.subr.mxu0 %v483
    %681 = vmatpush2.msra.mxu0 %v482
    %682 = vmatprep.subr.mxu0 %v480
    %683 = vmatpush2.msra.mxu0 %v479
    %684 = vmatprep.subr.mxu0 %v477
    %685 = vmatpush2.msra.mxu0 %v476
    %686 = vmatprep.subr.mxu0 %v474
    %687 = vmatpush2.msra.mxu0 %v473
    %688 = vmatprep.subr.mxu0 %v471
    %689 = vmatpush2.msra.mxu0 %v470
    %690 = vmatprep.subr.mxu0 %v468
    %691 = vmatpush2.msra.mxu0 %v467
    %692 = vmatprep.mubr.f32.mxu0 %v416
    %693 = vmatmul.mubr.f32.gmra.mxu0 %v415
    %v694 = vpop.f32.mrf.mxu0
    %v695 = vadd.f32 %v616, %v694
    %v696 = vpop.f32.mrf.mxu0
    %v697 = vadd.f32 %v620, %v696
    %698 = vdwg.mxu0
    %699 = vmatprep.subr.mxu0 %v561
    %700 = vmatpush1.msra.mxu0 %v560
    %701 = vmatprep.subr.mxu0 %v558
    %702 = vmatpush1.msra.mxu0 %v557
    %703 = vmatprep.subr.mxu0 %v555
    %704 = vmatpush1.msra.mxu0 %v554
    %705 = vmatprep.subr.mxu0 %v552
    %706 = vmatpush1.msra.mxu0 %v551
    %707 = vmatprep.subr.mxu0 %v549
    %708 = vmatpush1.msra.mxu0 %v548
    %709 = vmatprep.subr.mxu0 %v546
    %710 = vmatpush1.msra.mxu0 %v545
    %711 = vmatprep.subr.mxu0 %v543
    %712 = vmatpush1.msra.mxu0 %v542
    %713 = vmatprep.subr.mxu0 %v540
    %714 = vmatpush1.msra.mxu0 %v539
    %715 = vmatprep.subr.mxu0 %v537
    %716 = vmatpush1.msra.mxu0 %v536
    %717 = vmatprep.subr.mxu0 %v534
    %718 = vmatpush1.msra.mxu0 %v533
    %719 = vmatprep.subr.mxu0 %v531
    %720 = vmatpush1.msra.mxu0 %v530
    %721 = vmatprep.subr.mxu0 %v528
    %722 = vmatpush1.msra.mxu0 %v527
    %723 = vmatprep.subr.mxu0 %v525
    %724 = vmatpush1.msra.mxu0 %v524
    %725 = vmatprep.subr.mxu0 %v522
    %726 = vmatpush1.msra.mxu0 %v521
    %727 = vmatprep.subr.mxu0 %v519
    %728 = vmatpush1.msra.mxu0 %v518
    %729 = vmatprep.subr.mxu0 %v516
    %730 = vmatpush1.msra.mxu0 %v515
    %731 = vmatprep.subr.mxu0 %v609
    %732 = vmatpush2.msra.mxu0 %v608
    %733 = vmatprep.subr.mxu0 %v606
    %734 = vmatpush2.msra.mxu0 %v605
    %735 = vmatprep.subr.mxu0 %v603
    %736 = vmatpush2.msra.mxu0 %v602
    %737 = vmatprep.subr.mxu0 %v600
    %738 = vmatpush2.msra.mxu0 %v599
    %739 = vmatprep.subr.mxu0 %v597
    %740 = vmatpush2.msra.mxu0 %v596
    %741 = vmatprep.subr.mxu0 %v594
    %742 = vmatpush2.msra.mxu0 %v593
    %743 = vmatprep.subr.mxu0 %v591
    %744 = vmatpush2.msra.mxu0 %v590
    %745 = vmatprep.subr.mxu0 %v588
    %746 = vmatpush2.msra.mxu0 %v587
    %747 = vmatprep.subr.mxu0 %v585
    %748 = vmatpush2.msra.mxu0 %v584
    %749 = vmatprep.subr.mxu0 %v582
    %750 = vmatpush2.msra.mxu0 %v581
    %751 = vmatprep.subr.mxu0 %v579
    %752 = vmatpush2.msra.mxu0 %v578
    %753 = vmatprep.subr.mxu0 %v576
    %754 = vmatpush2.msra.mxu0 %v575
    %755 = vmatprep.subr.mxu0 %v573
    %756 = vmatpush2.msra.mxu0 %v572
    %757 = vmatprep.subr.mxu0 %v570
    %758 = vmatpush2.msra.mxu0 %v569
    %759 = vmatprep.subr.mxu0 %v567
    %760 = vmatpush2.msra.mxu0 %v566
    %761 = vmatprep.subr.mxu0 %v564
    %762 = vmatpush2.msra.mxu0 %v563
    %763 = vmatprep.mubr.f32.mxu0 %v418
    %764 = vmatmul.mubr.f32.gmra.mxu0 %v417
    %v765 = vpop.f32.mrf.mxu0
    %v766 = vadd.f32 %v695, %v765
    %v767 = vpop.f32.mrf.mxu0
    %v768 = vadd.f32 %v697, %v767
    %769 = vdwg.mxu0
    %770 = vmatprep.subr.mxu0 0.0
    %771 = vmatpush1.msra.mxu0 %v466
    %772 = vmatprep.subr.mxu0 0.0
    %773 = vmatpush1.msra.mxu0 %v463
    %774 = vmatprep.subr.mxu0 0.0
    %775 = vmatpush1.msra.mxu0 %v460
    %776 = vmatprep.subr.mxu0 0.0
    %777 = vmatpush1.msra.mxu0 %v457
    %778 = vmatprep.subr.mxu0 0.0
    %779 = vmatpush1.msra.mxu0 %v454
    %780 = vmatprep.subr.mxu0 0.0
    %781 = vmatpush1.msra.mxu0 %v451
    %782 = vmatprep.subr.mxu0 0.0
    %783 = vmatpush1.msra.mxu0 %v448
    %784 = vmatprep.subr.mxu0 0.0
    %785 = vmatpush1.msra.mxu0 %v445
    %786 = vmatprep.subr.mxu0 0.0
    %787 = vmatpush1.msra.mxu0 %v442
    %788 = vmatprep.subr.mxu0 0.0
    %789 = vmatpush1.msra.mxu0 %v439
    %790 = vmatprep.subr.mxu0 0.0
    %791 = vmatpush1.msra.mxu0 %v436
    %792 = vmatprep.subr.mxu0 0.0
    %793 = vmatpush1.msra.mxu0 %v433
    %794 = vmatprep.subr.mxu0 0.0
    %795 = vmatpush1.msra.mxu0 %v430
    %796 = vmatprep.subr.mxu0 0.0
    %797 = vmatpush1.msra.mxu0 %v427
    %798 = vmatprep.subr.mxu0 0.0
    %799 = vmatpush1.msra.mxu0 %v424
    %800 = vmatprep.subr.mxu0 0.0
    %801 = vmatpush1.msra.mxu0 %v421
    %802 = vmatprep.subr.mxu0 0.0
    %803 = vmatpush2.msra.mxu0 %v514
    %804 = vmatprep.subr.mxu0 0.0
    %805 = vmatpush2.msra.mxu0 %v511
    %806 = vmatprep.subr.mxu0 0.0
    %807 = vmatpush2.msra.mxu0 %v508
    %808 = vmatprep.subr.mxu0 0.0
    %809 = vmatpush2.msra.mxu0 %v505
    %810 = vmatprep.subr.mxu0 0.0
    %811 = vmatpush2.msra.mxu0 %v502
    %812 = vmatprep.subr.mxu0 0.0
    %813 = vmatpush2.msra.mxu0 %v499
    %814 = vmatprep.subr.mxu0 0.0
    %815 = vmatpush2.msra.mxu0 %v496
    %816 = vmatprep.subr.mxu0 0.0
    %817 = vmatpush2.msra.mxu0 %v493
    %818 = vmatprep.subr.mxu0 0.0
    %819 = vmatpush2.msra.mxu0 %v490
    %820 = vmatprep.subr.mxu0 0.0
    %821 = vmatpush2.msra.mxu0 %v487
    %822 = vmatprep.subr.mxu0 0.0
    %823 = vmatpush2.msra.mxu0 %v484
    %824 = vmatprep.subr.mxu0 0.0
    %825 = vmatpush2.msra.mxu0 %v481
    %826 = vmatprep.subr.mxu0 0.0
    %827 = vmatpush2.msra.mxu0 %v478
    %828 = vmatprep.subr.mxu0 0.0
    %829 = vmatpush2.msra.mxu0 %v475
    %830 = vmatprep.subr.mxu0 0.0
    %831 = vmatpush2.msra.mxu0 %v472
    %832 = vmatprep.subr.mxu0 0.0
    %833 = vmatpush2.msra.mxu0 %v469
    %834 = vmatprep.mubr.f32.mxu0 %v416
    %835 = vmatmul.mubr.f32.gmra.mxu0 %v415
    %v836 = vpop.f32.mrf.mxu0
    %v837 = vadd.f32 %v624, %v836
    %v838 = vpop.f32.mrf.mxu0
    %839 = vdwg.mxu0
    %840 = vmatprep.subr.mxu0 0.0
    %841 = vmatpush1.msra.mxu0 %v562
    %842 = vmatprep.subr.mxu0 0.0
    %843 = vmatpush1.msra.mxu0 %v559
    %844 = vmatprep.subr.mxu0 0.0
    %845 = vmatpush1.msra.mxu0 %v556
    %846 = vmatprep.subr.mxu0 0.0
    %847 = vmatpush1.msra.mxu0 %v553
    %848 = vmatprep.subr.mxu0 0.0
    %849 = vmatpush1.msra.mxu0 %v550
    %850 = vmatprep.subr.mxu0 0.0
    %851 = vmatpush1.msra.mxu0 %v547
    %852 = vmatprep.subr.mxu0 0.0
    %853 = vmatpush1.msra.mxu0 %v544
    %854 = vmatprep.subr.mxu0 0.0
    %855 = vmatpush1.msra.mxu0 %v541
    %856 = vmatprep.subr.mxu0 0.0
    %857 = vmatpush1.msra.mxu0 %v538
    %858 = vmatprep.subr.mxu0 0.0
    %859 = vmatpush1.msra.mxu0 %v535
    %860 = vmatprep.subr.mxu0 0.0
    %861 = vmatpush1.msra.mxu0 %v532
    %862 = vmatprep.subr.mxu0 0.0
    %863 = vmatpush1.msra.mxu0 %v529
    %864 = vmatprep.subr.mxu0 0.0
    %865 = vmatpush1.msra.mxu0 %v526
    %866 = vmatprep.subr.mxu0 0.0
    %867 = vmatpush1.msra.mxu0 %v523
    %868 = vmatprep.subr.mxu0 0.0
    %869 = vmatpush1.msra.mxu0 %v520
    %870 = vmatprep.subr.mxu0 0.0
    %871 = vmatpush1.msra.mxu0 %v517
    %872 = vmatprep.subr.mxu0 0.0
    %873 = vmatpush2.msra.mxu0 %v610
    %874 = vmatprep.subr.mxu0 0.0
    %875 = vmatpush2.msra.mxu0 %v607
    %876 = vmatprep.subr.mxu0 0.0
    %877 = vmatpush2.msra.mxu0 %v604
    %878 = vmatprep.subr.mxu0 0.0
    %879 = vmatpush2.msra.mxu0 %v601
    %880 = vmatprep.subr.mxu0 0.0
    %881 = vmatpush2.msra.mxu0 %v598
    %882 = vmatprep.subr.mxu0 0.0
    %883 = vmatpush2.msra.mxu0 %v595
    %884 = vmatprep.subr.mxu0 0.0
    %885 = vmatpush2.msra.mxu0 %v592
    %886 = vmatprep.subr.mxu0 0.0
    %887 = vmatpush2.msra.mxu0 %v589
    %888 = vmatprep.subr.mxu0 0.0
    %889 = vmatpush2.msra.mxu0 %v586
    %890 = vmatprep.subr.mxu0 0.0
    %891 = vmatpush2.msra.mxu0 %v583
    %892 = vmatprep.subr.mxu0 0.0
    %893 = vmatpush2.msra.mxu0 %v580
    %894 = vmatprep.subr.mxu0 0.0
    %895 = vmatpush2.msra.mxu0 %v577
    %896 = vmatprep.subr.mxu0 0.0
    %897 = vmatpush2.msra.mxu0 %v574
    %898 = vmatprep.subr.mxu0 0.0
    %899 = vmatpush2.msra.mxu0 %v571
    %900 = vmatprep.subr.mxu0 0.0
    %901 = vmatpush2.msra.mxu0 %v568
    %902 = vmatprep.subr.mxu0 0.0
    %903 = vmatpush2.msra.mxu0 %v565
    %904 = vmatprep.mubr.f32.mxu0 %v418
    %905 = vmatmul.mubr.f32.gmra.mxu0 %v417
    %v906 = vpop.f32.mrf.mxu0
    %v907 = vadd.f32 %v837, %v906
    %v908 = vpop.f32.mrf.mxu0
    %909 = vdwg.mxu0
    %v910 = vmax.f32 %v766, 0.0
    %v911 = vmax.f32 %v768, 0.0
    %v912 = vmax.f32 %v907, 0.0
    %v913 = vld [vmem:[%s7] sm:$0x7]
    %v915 = vlaneseq
    %v916 = vshrl.u32 %v915, 7
    %v917 = vsub.s32 0, %v916
    %v918 = vrot.slane %v913, %v917
    %v919 = vlaneseq
    %v920 = vshrl.u32 %v919, 7
    %v921 = vsub.s32 1, %v920
    %v922 = vrot.slane %v913, %v921
    %v923 = vlaneseq
    %v924 = vshrl.u32 %v923, 7
    %v925 = vsub.s32 2, %v924
    %v926 = vrot.slane %v913, %v925
    %v930 = vmul.f32 %v910, %v918
    %v931 = vmul.f32 %v911, %v922
    %v932 = vmul.f32 %v912, %v926
    %v933 = vadd.f32 %v930, %v931
    %v934 = vadd.f32 %v933, %v932
    %935 = vadd.xlane.f32.xlu0 %v934
    %v936 = vpop.xlane.xlu0 %935
    %s937 = sld [smem:[#allocation2]]
    %v938 = vstv %s937
    %v939 = vadd.f32 %v936, %v938
    %vm940 = vcmask 7168
    %941 = vst.msk [vmem:[%s9] sm:$0xff] %vm940, %v939
    // Predicated region
    $region50: #{critic_forward.1} parent=1 // pred_check
      _
    $region51: #{critic_forward.1} parent=1 // pred_check_branch
      %943 = sbr.rel (0) target = $region53
    $region52: #{critic_forward.1} parent=1 // pred_region
      _
    $region53: #{critic_forward.1} parent=1 // pred_fallthru
      _
    // Predicated region
    $region54: #{critic_forward.1} parent=1 // pred_check
      _
    $region55: #{critic_forward.1} parent=1 // pred_check_branch
      %945 = sbr.rel (0) target = $region57
    $region56: #{critic_forward.1} parent=1 // pred_region
      _
    $region57: #{critic_forward.1} parent=1 // pred_fallthru
      _
    %946 = vsyncpa [#allocation4], 1
    %947 = vsyncpa [#allocation6], 1

</llo_original>
